<compile_context>
chip_gen: v7x
topology: tpu7x:2x2x1
jax: 0.10.0
libtpu: 0.0.40
codegen_flags: <defaults>
</compile_context>

<pallas_src>
import math

import jax
import jax.numpy as jnp
from jax.experimental import pallas as pl
from jax.experimental.pallas import tpu as pltpu


def _drop_path_kernel(scale_ref, x_ref, o_ref):
    # scale_ref: (B,) float32 in SMEM (scalar-prefetched per-sample mask/keep_prob)
    # x_ref:     (1, TILE_P, TILE_F) activation tile in VMEM
    # o_ref:     (1, TILE_P, TILE_F)
    s = scale_ref[pl.program_id(0)]                     # f32 scalar (0 or 1/keep_prob)
    o_ref[...] = (x_ref[...] * s).astype(o_ref.dtype)   # compute in f32, round once


def _flatten_dims(shape):
    """Return (rows_per_sample P, feature width F) for a lane/sublane-friendly layout."""
    if len(shape) >= 3:
        P = shape[1]
        F = math.prod(shape[2:])
        if F % 128 != 0 and (P * F) % 128 == 0:
            # Trailing spatial size not lane-aligned (e.g. 14*14=196) but folding
            # channels in makes it so -> prefer a large lane-dense last dim.
            return 1, P * F
        return P, F
    if len(shape) == 2:
        return 1, shape[1]
    return 1, 1


def _select_tiles(P, F, itemsize, block_budget):
    """Prefer full feature width; shrink rows first, split F only as a last resort."""
    min_rows = {4: 8, 2: 16, 1: 32}.get(itemsize, 8)   # sublane multiple per dtype
    row_bytes = F * itemsize
    if P * row_bytes <= block_budget:
        return P, F                                     # whole sample in one slab
    rows_fit = block_budget // row_bytes
    if rows_fit >= min(min_rows, P):
        tile_p = (rows_fit // min_rows) * min_rows      # multiple of sublane tile
        return min(max(tile_p, min_rows), P), F         # full-width contiguous slab
    # Even a minimum-row slab exceeds the budget: split the feature axis.
    tile_p = min(P, min_rows)
    tf = block_budget // (tile_p * itemsize)
    return tile_p, max(128, (tf // 128) * 128)


def drop_path(x, drop_prob: float = 0.0, training: bool = False, *, key=None,
              block_budget: int = 4 * 1024 * 1024,
              min_pallas_bytes: int = 256 * 1024,
              donate_x: bool = False):
    """Exact semantics of drop_path_f: per-sample Bernoulli(keep_prob) mask,
    surviving samples scaled by 1/keep_prob.

    NOTE: drop_prob / training must be static Python values (as in the PyTorch
    reference); a traced drop_prob under jit is not supported.
    """
    if drop_prob == 0.0 or not training:
        return x
    if key is None:
        raise ValueError("drop_path: `key` is required when training with drop_prob > 0.")

    keep_prob = 1.0 - drop_prob
    B = x.shape[0]
    P, F = _flatten_dims(x.shape)
    itemsize = jnp.dtype(x.dtype).itemsize

    # Per-sample mask / scale in float32 (glue code, not the hot path).
    u = jax.random.uniform(key, (B,), dtype=jnp.float32)
    scale = jnp.floor(keep_prob + u) / keep_prob        # (B,) f32: 0.0 or 1/keep_prob

    # Small-tensor fast path: fixed pallas_call + per-grid-step cost dominates.
    if x.size * itemsize < min_pallas_bytes:
        bshape = (B,) + (1,) * (x.ndim - 1)
        return (x * scale.reshape(bshape)).astype(x.dtype)

    TILE_P, TILE_F = _select_tiles(P, F, itemsize, block_budget)
    grid = (B, pl.cdiv(P, TILE_P), pl.cdiv(F, TILE_F))
    x3 = x.reshape(B, P, F)

    block_bytes = TILE_P * TILE_F * itemsize
    # 2x double-buffered (in + out) blocks + slack; always past v5e's 16 MiB default,
    # well within v7x's 64 MiB physical VMEM.
    vmem_limit = int(max(16 * 1024 * 1024, 4 * block_bytes + (2 << 20)))

    out3 = pl.pallas_call(
        _drop_path_kernel,
        out_shape=jax.ShapeDtypeStruct((B, P, F), x.dtype),
        grid_spec=pltpu.PrefetchScalarGridSpec(
            num_scalar_prefetch=1,                       # per-sample scale -> SMEM
            grid=grid,
            in_specs=[pl.BlockSpec((1, TILE_P, TILE_F), lambda b, i, j, s: (b, i, j))],
            out_specs=pl.BlockSpec((1, TILE_P, TILE_F), lambda b, i, j, s: (b, i, j)),
        ),
        compiler_params=pltpu.CompilerParams(
            dimension_semantics=("parallel", "parallel", "parallel"),
            vmem_limit_bytes=vmem_limit,
        ),
        input_output_aliases=({1: 0} if donate_x else {}),   # optional: donate x
    )(scale, x3)

    return out3.reshape(x.shape)


class DropPath:
    """JAX/Pallas equivalent of the PyTorch DropPath module (no parameters)."""

    def __init__(self, drop_prob=None):
        self.drop_prob = drop_prob if drop_prob is not None else 0.0
        self.training = True

    def __call__(self, x, key=None, **kwargs):
        return drop_path(x, self.drop_prob, self.training, key=key, **kwargs)


if __name__ == "__main__":
    key = jax.random.PRNGKey(0)
    k_x, k_mask = jax.random.split(key)

    B, C, H, W = 2, 4, 16, 16
    x = jax.random.normal(k_x, (B, C, H, W), dtype=jnp.float32)

    # --- training mode with drop_prob > 0: Pallas kernel path (forced) ---
    module = DropPath(drop_prob=0.3)
    module.training = True
    out = module(x, key=k_mask, min_pallas_bytes=0)   # bypass small-tensor fast path
    out = jax.block_until_ready(out)

    # reference check (pure JAX, same mask derivation)
    keep_prob = 1.0 - 0.3
    u = jax.random.uniform(k_mask, (B,), dtype=jnp.float32)
    mask = jnp.floor(keep_prob + u).reshape(B, 1, 1, 1)
    ref = x / keep_prob * mask
    assert out.shape == x.shape and out.dtype == x.dtype
    assert jnp.allclose(out, ref, atol=1e-6, rtol=1e-6)

    # --- small-tensor fast path (default threshold) agrees with the kernel ---
    out_fast = jax.block_until_ready(module(x, key=k_mask))
    assert jnp.allclose(out_fast, ref, atol=1e-6, rtol=1e-6)

    # --- eval mode: identity passthrough ---
    module.training = False
    assert jnp.array_equal(jax.block_until_ready(module(x, key=k_mask)), x)

    # --- drop_prob == 0: identity passthrough ---
    module2 = DropPath(drop_prob=0.0)
    module2.training = True
    assert jnp.array_equal(jax.block_until_ready(module2(x, key=k_mask)), x)

    print("KERNEL_OK")
</pallas_src>

<mosaic_0001>
module attributes {stable_mosaic.version = 11 : i64} {
  func.func @_drop_path_kernel(%arg0: i32, %arg1: i32, %arg2: i32, %arg3: memref<2xf32, #tpu.memory_space<smem>>, %arg4: memref<1x4x256xf32, #tpu.memory_space<vmem>>, %arg5: memref<1x4x256xf32, #tpu.memory_space<vmem>>) attributes {dimension_semantics = [#tpu.dimension_semantics<parallel>, #tpu.dimension_semantics<parallel>, #tpu.dimension_semantics<parallel>], iteration_bounds = array<i64: 2, 1, 1>, scalar_prefetch = 1 : i64, scratch_operands = 0 : i64, tpu.core_type = #tpu.core_type<tc>, window_params = [{transform_indices = @transform_0, window_bounds = array<i64: 1, 4, 256>}, {transform_indices = @transform_1, window_bounds = array<i64: 1, 4, 256>}]} {
    %0 = arith.index_cast %arg0 : i32 to index
    %1 = memref.load %arg3[%0] : memref<2xf32, #tpu.memory_space<smem>>
    %c0 = arith.constant 0 : index
    %c0_0 = arith.constant 0 : index
    %c0_1 = arith.constant 0 : index
    %2 = vector.load %arg4[%c0, %c0_0, %c0_1] : memref<1x4x256xf32, #tpu.memory_space<vmem>>, vector<1x4x256xf32>
    %3 = vector.broadcast %1 : f32 to vector<1x4x256xf32>
    %4 = arith.mulf %2, %3 : vector<1x4x256xf32>
    %c0_2 = arith.constant 0 : index
    %c0_3 = arith.constant 0 : index
    %c0_4 = arith.constant 0 : index
    %5 = vector.load %arg5[%c0_2, %c0_3, %c0_4] : memref<1x4x256xf32, #tpu.memory_space<vmem>>, vector<1x4x256xf32>
    tpu.vector_store %arg5[%c0_2, %c0_3, %c0_4], %4 {strides = array<i32>} : memref<1x4x256xf32, #tpu.memory_space<vmem>>, vector<1x4x256xf32>,
    return
  }
  func.func @transform_0(%arg0: i32, %arg1: i32, %arg2: i32, %arg3: memref<2xf32, #tpu.memory_space<smem>>) -> (i32, i32, i32) {
    %c0_i32 = arith.constant 0 : i32
    return %arg0, %arg1, %arg2 : i32, i32, i32
  }
  func.func @transform_1(%arg0: i32, %arg1: i32, %arg2: i32, %arg3: memref<2xf32, #tpu.memory_space<smem>>) -> (i32, i32, i32) {
    %c0_i32 = arith.constant 0 : i32
    return %arg0, %arg1, %arg2 : i32, i32, i32
  }
}

</mosaic_0001>

<llo_original>
// kernel: tpu_custom_call.1
$region0: #{tpu_custom_call.1}
  #allocation0 [shape = 'u32[]', space=smem, size = 0x4, offset = 0x4, fixed_abs, tag = 'smem constant byte address 0x4 - core index']
  #allocation1 [shape = 'u32[144,128]{1,0:T(1,128)}', space=vmem, size = 0x12000, scoped, tag = 'internal scratch']
  #allocation2 [shape = 's32[1]{0}', space=sflag, size = 0x4, scoped, tag = 'scoped memory for tpu_custom_call.1']
  #allocation3 [shape = 'u8[512]{0}', space=smem, size = 0x200, scoped, tag = 'prefetched SMEM operand 0']
  %s0 = inlined_call_operand.hbm [shape: f32[2], index: 0, kind: input, shape index: {}]
  %s1 = inlined_call_operand.hbm [shape: f32[2,4,256], index: 1, kind: input, shape index: {}]
  %s2 = inlined_call_operand.hbm [shape: f32[2,4,256], index: 2, kind: output, shape index: {}]
  %s3 = sld [smem:[#allocation0]]
  $region41: #{tpu_custom_call.1} parent=0
    _
  %s5 = ssub.s32 1, %s3
  %s6 = scalar_select 0, %s5, %s3
  %8 = dma.hbm_to_smem %s0, 16, [#allocation3], [#allocation2]
  %9 = dma.done [#allocation2], 16
  %10 = sfence
  $region1: #{tpu_custom_call.1} parent=0
    #allocation4 [shape = 'u8[8192]{0}', space=vmem, size = 0x2000, scoped, tag = 'input window, operand 1']
    #allocation5 [shape = 's32[2]{0}', space=sflag, size = 0x8, scoped, tag = 'scoped memory for tpu_custom_call.1']
    #allocation6 [shape = 's32[2]{0}', space=sflag, size = 0x8, scoped, tag = 'scoped memory for tpu_custom_call.1']
    #allocation7 [shape = 'u8[8192]{0}', space=vmem, size = 0x2000, scoped, tag = 'output window, operand 0']
    %11 = vsyncpa [#allocation5], 0
    %s12 = scalar_lea.sflag [#allocation5], 1
    %13 = vsyncpa %s12, 0
    %14 = vsyncpa [#allocation6], 0
    %s15 = scalar_lea.sflag [#allocation6], 1
    %16 = vsyncpa %s15, 0
    loop: start=0, step=1, limit=4
    $region2: #{tpu_custom_call.1} parent=1 // loop_pre_header
      _
    $region3: #{tpu_custom_call.1} parent=1 // loop_header
      %s18 = sphi 0, %s22
      %p19 = scmp.ge.s32.totalorder %s18, 4
      %s25 = sphi 0, %s44
      %s26 = sphi 0, %s40
      %s27 = sphi 0, %s36
      %s28 = sphi 0, %s25
      %s29 = sphi 0, %s26
      %s30 = sphi 0, %s27
      %s31 = sphi 0, %s28
      %s32 = sphi 0, %s29
      %s33 = sphi 0, %s30
      %s51 = sphi 0, %s53
      %s54 = sphi 0, %s51
      %s55 = sphi 0, %s54
      %s71 = sphi 0, %s55
      %s81 = sphi 0, %s83
      %s84 = sphi 0, %s81
      %s85 = sphi 0, %s84
      %s101 = sphi 0, %s85
    $region4: #{tpu_custom_call.1} parent=1 // loop_header_branch
      %21 = sbr.rel (%p19) target = $region8
    $region5: #{tpu_custom_call.1} parent=1 // loop_body
      %s23 = ssub.s32 %s18, 1
      %s24 = ssub.s32 %s18, 2
      %s34 = sadd.s32 1, %s27
      %p35 = scmp.ge.s32.totalorder %s34, 1
      %s36 = scalar_select %p35, 0, %s34
      %s37 = sadd.s32 1, %s26
      %s38 = scalar_select %p35, %s37, %s26
      %p39 = scmp.ge.s32.totalorder %s38, 1
      %s40 = scalar_select %p39, 0, %s38
      %s41 = sadd.s32 1, %s25
      %s42 = scalar_select %p39, %s41, %s25
      %p43 = scmp.ge.s32.totalorder %s42, 2
      %s44 = scalar_select %p43, 0, %s42
      %s45 = ssub.s32 %s25, %s44
      %s46 = ssub.s32 %s26, %s40
      %s47 = sor.u32 %s45, %s46
      %s48 = ssub.s32 %s27, %s36
      %s49 = sor.u32 %s47, %s48
      %p50 = scmp.eq.s32.totalorder %s49, 0
      %s52 = sadd.s32 %s51, 1
      %s53 = scalar_select %p50, %s51, %s52
      %p56 = pneg %p50
      %p57 = scmp.eq.s32.totalorder %s18, 1
      %p58 = por %p56, %p57
      %p59 = scmp.ne.s32.totalorder %s51, %s54
      %p60 = scmp.eq.s32.totalorder %s18, 0
      %p61 = por %p59, %p60
      %p62 = scmp.ne.s32.totalorder %s51, %s54
      %p63 = scmp.eq.s32.totalorder %s23, 1
      %p64 = por %p62, %p63
      %p65 = scmp.ne.s32.totalorder %s54, %s55
      %p66 = scmp.eq.s32.totalorder %s23, 0
      %p67 = por %p65, %p66
      %p68 = scmp.ne.s32.totalorder %s54, %s55
      %p69 = scmp.eq.s32.totalorder %s24, 1
      %p70 = por %p68, %p69
      %p72 = scmp.ne.s32.totalorder %s55, %s71
      %p73 = scmp.eq.s32.totalorder %s24, 0
      %p74 = por %p72, %p73
      %s75 = ssub.s32 %s25, %s44
      %s76 = ssub.s32 %s26, %s40
      %s77 = sor.u32 %s75, %s76
      %s78 = ssub.s32 %s27, %s36
      %s79 = sor.u32 %s77, %s78
      %p80 = scmp.eq.s32.totalorder %s79, 0
      %s82 = sadd.s32 %s81, 1
      %s83 = scalar_select %p80, %s81, %s82
      %p86 = pneg %p80
      %p87 = scmp.eq.s32.totalorder %s18, 1
      %p88 = por %p86, %p87
      %p89 = scmp.ne.s32.totalorder %s81, %s84
      %p90 = scmp.eq.s32.totalorder %s18, 0
      %p91 = por %p89, %p90
      %p92 = scmp.ne.s32.totalorder %s81, %s84
      %p93 = scmp.eq.s32.totalorder %s23, 1
      %p94 = por %p92, %p93
      %p95 = scmp.ne.s32.totalorder %s84, %s85
      %p96 = scmp.eq.s32.totalorder %s23, 0
      %p97 = por %p95, %p96
      %p98 = scmp.ne.s32.totalorder %s84, %s85
      %p99 = scmp.eq.s32.totalorder %s24, 1
      %p100 = por %p98, %p99
      %p102 = scmp.ne.s32.totalorder %s85, %s101
      %p103 = scmp.eq.s32.totalorder %s24, 0
      %p104 = por %p102, %p103
      %p105 = scmp.le.s32.totalorder 1, %s18
      %p106 = scmp.lt.s32.totalorder %s18, 3
      %p107 = pnand %p105, %p106
      %p108 = pneg %p107
      // Predicated region
      $region9: #{tpu_custom_call.1} parent=5 // pred_check
        _
      $region10: #{tpu_custom_call.1} parent=5 // pred_check_branch
        %110 = sbr.rel (%p107) target = $region12
      $region11: #{tpu_custom_call.1} parent=5 // pred_region
        %s111 = ssub.s32 %s18, 1
      $region12: #{tpu_custom_call.1} parent=5 // pred_fallthru
        _
      %p112 = scmp.lt.s32.totalorder %s18, 2
      // Predicated region
      $region13: #{tpu_custom_call.1} parent=5 // pred_check
        %p113 = pneg %p112
      $region14: #{tpu_custom_call.1} parent=5 // pred_check_branch
        %115 = sbr.rel (%p113) target = $region16
      $region15: #{tpu_custom_call.1} parent=5 // pred_region
        // Predicated region
        $region17: #{tpu_custom_call.1} parent=15 // pred_check
          %p116 = pneg %p61
        $region18: #{tpu_custom_call.1} parent=15 // pred_check_branch
          %118 = sbr.rel (%p116) target = $region20
        $region19: #{tpu_custom_call.1} parent=15 // pred_region
          %s119 = sand.u32 %s51, 1
          %s120 = scalar_lea.sflag [#allocation5], %s119
          %s121 = sand.u32 %s51, 1
          %s122 = smul.addr %s121, 8
          %s123 = scalar_lea.vmem [#allocation4], %s122
          %s124 = smul.u32 2, %s27
          %s126 = ssub.s32 128, 128
          %127 = vsyncadd %s120, %s126
          %s128 = smul.addr %s26, 2
          %s129 = sadd.s32 %s124, %s128
          %s130 = smul.addr %s25, 2
          %s131 = sadd.s32 %s129, %s130
          %s132 = smul.addr %s131, 64
          %s133 = scalar_lea.hbm %s1, %s132
          %s135 = sshll.u32 %s123, 4
          %s136 = int_to_ptr.vmem [resolvable:$true] %s135
          %138 = dma.hbm_to_vmem [thread:$0]  %s133, 128, %s136, %s120
        $region20: #{tpu_custom_call.1} parent=15 // pred_fallthru
          _
      $region16: #{tpu_custom_call.1} parent=5 // pred_fallthru
        _
      %p139 = scmp.le.s32.totalorder 1, %s18
      %p140 = scmp.lt.s32.totalorder %s18, 3
      %p141 = pnand %p139, %p140
      %p142 = pneg %p141
      // Predicated region
      $region21: #{tpu_custom_call.1} parent=5 // pred_check
        _
      $region22: #{tpu_custom_call.1} parent=5 // pred_check_branch
        %144 = sbr.rel (%p141) target = $region24
      $region23: #{tpu_custom_call.1} parent=5 // pred_region
        %s145 = ssub.s32 %s18, 1
        %s146 = sand.u32 %s54, 1
        %s147 = scalar_lea.sflag [#allocation5], %s146
        %s148 = sand.u32 %s54, 1
        %s149 = smul.addr %s148, 8
        %s150 = scalar_lea.vmem [#allocation4], %s149
        // Predicated region
        $region25: #{tpu_custom_call.1} parent=23 // pred_check
          %p151 = pneg %p67
        $region26: #{tpu_custom_call.1} parent=23 // pred_check_branch
          %153 = sbr.rel (%p151) target = $region28
        $region27: #{tpu_custom_call.1} parent=23 // pred_region
          %154 = dma.done %s147, 128
        $region28: #{tpu_custom_call.1} parent=23 // pred_fallthru
          _
        %s155 = sand.u32 %s54, 1
        %s156 = scalar_lea.sflag [#allocation5], %s155
        %s157 = sand.u32 %s54, 1
        %s158 = smul.addr %s157, 8
        %s159 = scalar_lea.vmem [#allocation4], %s158
        %p160 = pneg %p67
        %p161 = pneg %p64
        %p162 = pneg %p97
        %p163 = pneg %p94
        %s164 = sand.u32 %s84, 1
        %s165 = scalar_lea.sflag [#allocation6], %s164
        %s166 = sand.u32 %s84, 1
        %s167 = smul.addr %s166, 8
        %s168 = scalar_lea.vmem [#allocation7], %s167
        %s169 = smul.u32 2, %s30
        %s170 = smul.u32 2, %s30
        %s171 = sld [smem:[#allocation3 + %s28]]
        %v172 = vld [vmem:[%s150] sm:$0xff]
        %v173 = vstv %s171
        %v174 = vmul.f32 %v172, %v173
        %175 = vst [vmem:[%s168] sm:$0xff] %v174
        %s176 = sand.u32 %s84, 1
        %s177 = scalar_lea.sflag [#allocation6], %s176
        %s178 = sand.u32 %s84, 1
        %s179 = smul.addr %s178, 8
        %s180 = scalar_lea.vmem [#allocation7], %s179
        // Predicated region
        $region29: #{tpu_custom_call.1} parent=23 // pred_check
          %p181 = pneg %p94
        $region30: #{tpu_custom_call.1} parent=23 // pred_check_branch
          %183 = sbr.rel (%p181) target = $region32
        $region31: #{tpu_custom_call.1} parent=23 // pred_region
          %s184 = smul.u32 2, %s30
          %s186 = ssub.s32 128, 128
          %187 = vsyncadd %s177, %s186
          %s188 = smul.addr %s29, 2
          %s189 = sadd.s32 %s184, %s188
          %s190 = smul.addr %s28, 2
          %s191 = sadd.s32 %s189, %s190
          %s192 = smul.addr %s191, 64
          %s193 = scalar_lea.hbm %s2, %s192
          %s195 = sshll.u32 %s180, 4
          %s196 = int_to_ptr.vmem [resolvable:$true] %s195
          %198 = dma.vmem_to_hbm [thread:$0]  %s196, 128, %s193, %s177
        $region32: #{tpu_custom_call.1} parent=23 // pred_fallthru
          _
      $region24: #{tpu_custom_call.1} parent=5 // pred_fallthru
        _
      %p199 = scmp.le.s32.totalorder 2, %s18
      // Predicated region
      $region33: #{tpu_custom_call.1} parent=5 // pred_check
        %p200 = pneg %p199
      $region34: #{tpu_custom_call.1} parent=5 // pred_check_branch
        %202 = sbr.rel (%p200) target = $region36
      $region35: #{tpu_custom_call.1} parent=5 // pred_region
        %s203 = ssub.s32 %s18, 2
        // Predicated region
        $region37: #{tpu_custom_call.1} parent=35 // pred_check
          %p204 = pneg %p100
        $region38: #{tpu_custom_call.1} parent=35 // pred_check_branch
          %206 = sbr.rel (%p204) target = $region40
        $region39: #{tpu_custom_call.1} parent=35 // pred_region
          %s207 = sand.u32 %s85, 1
          %s208 = scalar_lea.sflag [#allocation6], %s207
          %s209 = sand.u32 %s85, 1
          %s210 = smul.addr %s209, 8
          %s211 = scalar_lea.vmem [#allocation7], %s210
          %212 = dma.done %s208, 128
        $region40: #{tpu_custom_call.1} parent=35 // pred_fallthru
          _
      $region36: #{tpu_custom_call.1} parent=5 // pred_fallthru
        _
    $region6: #{tpu_custom_call.1} parent=1 // loop_footer
      %s22 = sadd.s32 1, %s18
    $region7: #{tpu_custom_call.1} parent=1 // loop_footer_branch
      %17 = sbr.rel target = $region3
    $region8: #{tpu_custom_call.1} parent=1 // loop_exit
      _
    %213 = vsyncpa [#allocation5], 1
    %s214 = scalar_lea.sflag [#allocation5], 1
    %215 = vsyncpa %s214, 1
    %216 = vsyncpa [#allocation6], 1
    %s217 = scalar_lea.sflag [#allocation6], 1
    %218 = vsyncpa %s217, 1

</llo_original>
